<compile_context>
chip_gen: v5e
topology: v5e:2x2
jax: 0.10.0
libtpu: 0.0.40
codegen_flags: <defaults>
</compile_context>

<pallas_src>
import functools
import math

import jax
import jax.numpy as jnp
from jax.experimental import pallas as pl
from jax.experimental.pallas import tpu as pltpu


def _round_up(v, m):
    return (v + m - 1) // m * m


# ----------------------------------------------------------------------------
# Fused kernel: one batch tile of the full NeuralDyn forward.
# ----------------------------------------------------------------------------
def _neural_dyn_kernel(x_ref, noise_ref, wt_ref, b_ref, g_ref, sig_ref, sigt_ref,
                       o_ref, *, dt, synap, compute_dtype):
    x = x_ref[...]                                   # [tile_m, H] float32

    if synap:
        # non_lin(x) then Linear
        h = jnp.maximum(x, 0.0).astype(compute_dtype)
        v = jnp.dot(h, wt_ref[...],
                    preferred_element_type=jnp.float32) + b_ref[...]
    else:
        # Linear then non_lin
        v = jnp.dot(x.astype(compute_dtype), wt_ref[...],
                    preferred_element_type=jnp.float32) + b_ref[...]
        v = jnp.maximum(v, 0.0)

    v = v - x                                        # residual
    v = g_ref[...] * v                               # gamma.T * v (row broadcast)

    # v @ sig @ sig.T  (left-to-right, exactly as in the PyTorch module)
    v = jnp.dot(v.astype(compute_dtype), sig_ref[...],
                preferred_element_type=jnp.float32)
    v = jnp.dot(v.astype(compute_dtype), sigt_ref[...],
                preferred_element_type=jnp.float32)

    # Euler-Maruyama update
    o_ref[...] = x + dt * v + math.sqrt(2.0 * dt) * noise_ref[...]


# ----------------------------------------------------------------------------
# Wrapper: fold parameter transposes / casts once, tile the batch, call Pallas.
# ----------------------------------------------------------------------------
def neural_dyn_forward(x, noise, params, *, dt=0.001, synap=True,
                       compute_dtype=jnp.bfloat16, tile_m=128):
    B, H = x.shape

    # One-time parameter prep (outside the kernel; no per-step activation
    # transposes or pad/slice round-trips).
    w_t = jnp.transpose(params["W_w"]).astype(compute_dtype)     # [H, H], x @ W.T
    sig = params["sig"].astype(compute_dtype)                    # [H, H]
    sig_t = jnp.transpose(params["sig"]).astype(compute_dtype)   # [H, H]
    b = params["W_b"].reshape(1, H).astype(jnp.float32)          # [1, H]
    g_row = params["gamma"].reshape(1, H).astype(jnp.float32)    # gamma.T -> [1, H]

    # Batch tiling: tile_m rows per grid step (pad the batch once if ragged).
    tm = min(tile_m, _round_up(B, 8))
    Bp = _round_up(B, tm)
    x_p = x if Bp == B else jnp.pad(x, ((0, Bp - B), (0, 0)))
    n_p = noise if Bp == B else jnp.pad(noise, ((0, Bp - B), (0, 0)))
    grid = (Bp // tm,)

    out = pl.pallas_call(
        functools.partial(_neural_dyn_kernel, dt=dt, synap=synap,
                          compute_dtype=compute_dtype),
        out_shape=jax.ShapeDtypeStruct((Bp, H), jnp.float32),
        grid=grid,
        in_specs=[
            pl.BlockSpec((tm, H), lambda i: (i, 0)),   # x tile
            pl.BlockSpec((tm, H), lambda i: (i, 0)),   # noise tile
            pl.BlockSpec((H, H), lambda i: (0, 0)),    # W.T   (resident)
            pl.BlockSpec((1, H), lambda i: (0, 0)),    # bias  (resident)
            pl.BlockSpec((1, H), lambda i: (0, 0)),    # gamma (resident)
            pl.BlockSpec((H, H), lambda i: (0, 0)),    # sig   (resident)
            pl.BlockSpec((H, H), lambda i: (0, 0)),    # sig.T (resident)
        ],
        out_specs=pl.BlockSpec((tm, H), lambda i: (i, 0)),
        compiler_params=pltpu.CompilerParams(
            dimension_semantics=("parallel",)),
    )(x_p, n_p, w_t, b, g_row, sig, sig_t)

    return out[:B] if Bp != B else out


# ----------------------------------------------------------------------------
# Deterministic synthetic parameters (PyTorch defaults: nn.Linear init,
# gamma = ones, sig = identity).
# ----------------------------------------------------------------------------
def init_params(key, hid_dim):
    k_w, k_b = jax.random.split(key)
    bound = 1.0 / math.sqrt(hid_dim)
    return {
        "W_w": jax.random.uniform(k_w, (hid_dim, hid_dim), jnp.float32,
                                  -bound, bound),
        "W_b": jax.random.uniform(k_b, (hid_dim,), jnp.float32, -bound, bound),
        "gamma": jnp.ones((hid_dim, 1), jnp.float32),
        "sig": jnp.eye(hid_dim, dtype=jnp.float32),
    }


if __name__ == "__main__":
    key = jax.random.PRNGKey(0)
    k_param, k_x, k_noise = jax.random.split(key, 3)

    B, H = 256, 32           # batch x hid_dim (small, grid=(2,) with tile_m=128)
    dt = 0.001

    params = init_params(k_param, H)
    x = jax.random.normal(k_x, (B, H), jnp.float32)
    noise = jax.random.normal(k_noise, (B, H), jnp.float32)

    fwd = jax.jit(functools.partial(neural_dyn_forward, dt=dt, synap=True))
    out = jax.block_until_ready(fwd(x, noise, params))

    assert out.shape == (B, H), out.shape
    assert out.dtype == jnp.float32

    # Pure-JAX f32 reference (same noise draw) for a correctness check.
    def ref_forward(x):
        v = jnp.maximum(x, 0.0) @ params["W_w"].T + params["W_b"]
        v = v - x
        v = params["gamma"].T * v
        v = v @ params["sig"] @ params["sig"].T
        return x + dt * v + math.sqrt(2.0 * dt) * noise

    ref = ref_forward(x)
    max_err = float(jnp.max(jnp.abs(out - ref)))
    assert max_err < 1e-3, f"max abs error vs reference: {max_err}"

    print("KERNEL_OK")
</pallas_src>

<mosaic_0001>
module attributes {stable_mosaic.version = 11 : i64} {
  func.func @_neural_dyn_kernel(%arg0: i32, %arg1: memref<128x32xf32, #tpu.memory_space<vmem>>, %arg2: memref<128x32xf32, #tpu.memory_space<vmem>>, %arg3: memref<32x32xbf16, #tpu.memory_space<vmem>>, %arg4: memref<1x32xf32, #tpu.memory_space<vmem>>, %arg5: memref<1x32xf32, #tpu.memory_space<vmem>>, %arg6: memref<32x32xbf16, #tpu.memory_space<vmem>>, %arg7: memref<32x32xbf16, #tpu.memory_space<vmem>>, %arg8: memref<128x32xf32, #tpu.memory_space<vmem>>) attributes {dimension_semantics = [#tpu.dimension_semantics<parallel>], iteration_bounds = array<i64: 2>, scalar_prefetch = 0 : i64, scratch_operands = 0 : i64, tpu.core_type = #tpu.core_type<tc>, window_params = [{transform_indices = @transform_0, window_bounds = array<i64: 128, 32>}, {transform_indices = @transform_1, window_bounds = array<i64: 128, 32>}, {pipeline_mode = #tpu.pipeline_mode<synchronous>, transform_indices = @transform_2, window_bounds = array<i64: 32, 32>}, {pipeline_mode = #tpu.pipeline_mode<synchronous>, transform_indices = @transform_3, window_bounds = array<i64: 1, 32>}, {pipeline_mode = #tpu.pipeline_mode<synchronous>, transform_indices = @transform_4, window_bounds = array<i64: 1, 32>}, {pipeline_mode = #tpu.pipeline_mode<synchronous>, transform_indices = @transform_5, window_bounds = array<i64: 32, 32>}, {pipeline_mode = #tpu.pipeline_mode<synchronous>, transform_indices = @transform_6, window_bounds = array<i64: 32, 32>}, {transform_indices = @transform_7, window_bounds = array<i64: 128, 32>}]} {
    %c0 = arith.constant 0 : index
    %c0_0 = arith.constant 0 : index
    %0 = vector.load %arg1[%c0, %c0_0] : memref<128x32xf32, #tpu.memory_space<vmem>>, vector<128x32xf32>
    %cst = arith.constant 0.000000e+00 : f32
    %1 = vector.broadcast %cst : f32 to vector<128x32xf32>
    %2 = arith.maximumf %0, %1 : vector<128x32xf32>
    %3 = arith.truncf %2 : vector<128x32xf32> to vector<128x32xbf16>
    %c0_1 = arith.constant 0 : index
    %c0_2 = arith.constant 0 : index
    %4 = vector.load %arg3[%c0_1, %c0_2] : memref<32x32xbf16, #tpu.memory_space<vmem>>, vector<32x32xbf16>
    %cst_3 = arith.constant dense<0.000000e+00> : vector<128x32xf32>
    %5 = tpu.matmul %3, %4, %cst_3 {dimension_numbers = #tpu.dot_dimension_numbers<[1], [0], [0], [1], [0, 0, 1, 1], [], []>} : vector<128x32xbf16>, vector<32x32xbf16>, vector<128x32xf32> -> vector<128x32xf32>
    %c0_4 = arith.constant 0 : index
    %c0_5 = arith.constant 0 : index
    %6 = vector.load %arg4[%c0_4, %c0_5] : memref<1x32xf32, #tpu.memory_space<vmem>>, vector<1x32xf32>
    %7 = vector.broadcast %6 : vector<1x32xf32> to vector<128x32xf32>
    %8 = arith.addf %5, %7 : vector<128x32xf32>
    %9 = arith.subf %8, %0 : vector<128x32xf32>
    %c0_6 = arith.constant 0 : index
    %c0_7 = arith.constant 0 : index
    %10 = vector.load %arg5[%c0_6, %c0_7] : memref<1x32xf32, #tpu.memory_space<vmem>>, vector<1x32xf32>
    %11 = vector.broadcast %10 : vector<1x32xf32> to vector<128x32xf32>
    %12 = arith.mulf %11, %9 : vector<128x32xf32>
    %13 = arith.truncf %12 : vector<128x32xf32> to vector<128x32xbf16>
    %c0_8 = arith.constant 0 : index
    %c0_9 = arith.constant 0 : index
    %14 = vector.load %arg6[%c0_8, %c0_9] : memref<32x32xbf16, #tpu.memory_space<vmem>>, vector<32x32xbf16>
    %cst_10 = arith.constant dense<0.000000e+00> : vector<128x32xf32>
    %15 = tpu.matmul %13, %14, %cst_10 {dimension_numbers = #tpu.dot_dimension_numbers<[1], [0], [0], [1], [0, 0, 1, 1], [], []>} : vector<128x32xbf16>, vector<32x32xbf16>, vector<128x32xf32> -> vector<128x32xf32>
    %16 = arith.truncf %15 : vector<128x32xf32> to vector<128x32xbf16>
    %c0_11 = arith.constant 0 : index
    %c0_12 = arith.constant 0 : index
    %17 = vector.load %arg7[%c0_11, %c0_12] : memref<32x32xbf16, #tpu.memory_space<vmem>>, vector<32x32xbf16>
    %cst_13 = arith.constant dense<0.000000e+00> : vector<128x32xf32>
    %18 = tpu.matmul %16, %17, %cst_13 {dimension_numbers = #tpu.dot_dimension_numbers<[1], [0], [0], [1], [0, 0, 1, 1], [], []>} : vector<128x32xbf16>, vector<32x32xbf16>, vector<128x32xf32> -> vector<128x32xf32>
    %cst_14 = arith.constant 1.000000e-03 : f32
    %19 = vector.broadcast %cst_14 : f32 to vector<128x32xf32>
    %20 = arith.mulf %19, %18 : vector<128x32xf32>
    %21 = arith.addf %0, %20 : vector<128x32xf32>
    %c0_15 = arith.constant 0 : index
    %c0_16 = arith.constant 0 : index
    %22 = vector.load %arg2[%c0_15, %c0_16] : memref<128x32xf32, #tpu.memory_space<vmem>>, vector<128x32xf32>
    %cst_17 = arith.constant 0.0447213612 : f32
    %23 = vector.broadcast %cst_17 : f32 to vector<128x32xf32>
    %24 = arith.mulf %23, %22 : vector<128x32xf32>
    %25 = arith.addf %21, %24 : vector<128x32xf32>
    %c0_18 = arith.constant 0 : index
    %c0_19 = arith.constant 0 : index
    %26 = vector.load %arg8[%c0_18, %c0_19] : memref<128x32xf32, #tpu.memory_space<vmem>>, vector<128x32xf32>
    tpu.vector_store %arg8[%c0_18, %c0_19], %25 {strides = array<i32>} : memref<128x32xf32, #tpu.memory_space<vmem>>, vector<128x32xf32>,
    return
  }
  func.func @transform_0(%arg0: i32) -> (i32, i32) {
    %c0_i32 = arith.constant 0 : i32
    %c0_i32_0 = arith.constant 0 : i32
    return %arg0, %c0_i32 : i32, i32
  }
  func.func @transform_1(%arg0: i32) -> (i32, i32) {
    %c0_i32 = arith.constant 0 : i32
    %c0_i32_0 = arith.constant 0 : i32
    return %arg0, %c0_i32 : i32, i32
  }
  func.func @transform_2(%arg0: i32) -> (i32, i32) {
    %c0_i32 = arith.constant 0 : i32
    %c0_i32_0 = arith.constant 0 : i32
    %c0_i32_1 = arith.constant 0 : i32
    return %c0_i32, %c0_i32_0 : i32, i32
  }
  func.func @transform_3(%arg0: i32) -> (i32, i32) {
    %c0_i32 = arith.constant 0 : i32
    %c0_i32_0 = arith.constant 0 : i32
    %c0_i32_1 = arith.constant 0 : i32
    return %c0_i32, %c0_i32_0 : i32, i32
  }
  func.func @transform_4(%arg0: i32) -> (i32, i32) {
    %c0_i32 = arith.constant 0 : i32
    %c0_i32_0 = arith.constant 0 : i32
    %c0_i32_1 = arith.constant 0 : i32
    return %c0_i32, %c0_i32_0 : i32, i32
  }
  func.func @transform_5(%arg0: i32) -> (i32, i32) {
    %c0_i32 = arith.constant 0 : i32
    %c0_i32_0 = arith.constant 0 : i32
    %c0_i32_1 = arith.constant 0 : i32
    return %c0_i32, %c0_i32_0 : i32, i32
  }
  func.func @transform_6(%arg0: i32) -> (i32, i32) {
    %c0_i32 = arith.constant 0 : i32
    %c0_i32_0 = arith.constant 0 : i32
    %c0_i32_1 = arith.constant 0 : i32
    return %c0_i32, %c0_i32_0 : i32, i32
  }
  func.func @transform_7(%arg0: i32) -> (i32, i32) {
    %c0_i32 = arith.constant 0 : i32
    %c0_i32_0 = arith.constant 0 : i32
    return %arg0, %c0_i32 : i32, i32
  }
}

</mosaic_0001>

<llo_original>
// kernel: neural_dyn_forward.1
$region0: #{neural_dyn_forward.1}
  #allocation0 [shape = 'u32[]', space=smem, size = 0x4, offset = 0x4, fixed_abs, tag = 'smem constant byte address 0x4 - core index']
  #allocation1 [shape = 'u32[72,128]{1,0:T(1,128)}', space=vmem, size = 0x9000, scoped, tag = 'internal scratch']
  %s0 = inlined_call_operand.vmem [shape: f32[256,32], index: 0, kind: input, shape index: {}]
  %s1 = inlined_call_operand.vmem [shape: f32[256,32], index: 1, kind: input, shape index: {}]
  %s2 = inlined_call_operand.vmem [shape: bf16[32,32], index: 2, kind: input, shape index: {}]
  %s3 = inlined_call_operand.vmem [shape: f32[1,32], index: 3, kind: input, shape index: {}]
  %s4 = inlined_call_operand.vmem [shape: f32[1,32], index: 4, kind: input, shape index: {}]
  %s5 = inlined_call_operand.vmem [shape: bf16[32,32], index: 5, kind: input, shape index: {}]
  %s6 = inlined_call_operand.vmem [shape: bf16[32,32], index: 6, kind: input, shape index: {}]
  %s7 = inlined_call_operand.vmem [shape: f32[256,32], index: 7, kind: output, shape index: {}]
  %s8 = sld [smem:[#allocation0]]
  $region61: #{neural_dyn_forward.1} parent=0
    _
  %s10 = ssub.s32 1, %s8
  %s11 = scalar_select 0, %s10, %s8
  loop: start=0, step=1, limit=4
  $region2: #{neural_dyn_forward.1} parent=0 // loop_pre_header
    _
  $region3: #{neural_dyn_forward.1} parent=0 // loop_header
    %s13 = sphi 0, %s17
    %p14 = scmp.ge.s32.totalorder %s13, 4
    %s23 = sphi 0, %s25
    %s26 = sphi 0, %s23
    %s27 = sphi 0, %s26
    %s43 = sphi 0, %s27
    %s49 = sphi 0, %s51
    %s52 = sphi 0, %s49
    %s53 = sphi 0, %s52
    %s69 = sphi 0, %s53
    %s73 = sphi 0, %s73
    %s75 = sphi 0, %s73
    %s76 = sphi 0, %s75
    %s90 = sphi 0, %s76
    %s94 = sphi 0, %s94
    %s96 = sphi 0, %s94
    %s97 = sphi 0, %s96
    %s111 = sphi 0, %s97
    %s115 = sphi 0, %s115
    %s117 = sphi 0, %s115
    %s118 = sphi 0, %s117
    %s132 = sphi 0, %s118
    %s136 = sphi 0, %s136
    %s138 = sphi 0, %s136
    %s139 = sphi 0, %s138
    %s153 = sphi 0, %s139
    %s157 = sphi 0, %s157
    %s159 = sphi 0, %s157
    %s160 = sphi 0, %s159
    %s174 = sphi 0, %s160
    %s180 = sphi 0, %s182
    %s183 = sphi 0, %s180
    %s184 = sphi 0, %s183
    %s200 = sphi 0, %s184
  $region4: #{neural_dyn_forward.1} parent=0 // loop_header_branch
    %16 = sbr.rel (%p14) target = $region8
  $region5: #{neural_dyn_forward.1} parent=0 // loop_body
    %s18 = ssub.s32 %s13, 1
    %s19 = ssub.s32 %s13, 2
    %s20 = sadd.s32 %s13, 1
    %s21 = ssub.s32 %s13, %s20
    %p22 = scmp.eq.s32.totalorder %s21, 0
    %s24 = sadd.s32 %s23, 1
    %s25 = scalar_select %p22, %s23, %s24
    %p28 = pneg %p22
    %p29 = scmp.eq.s32.totalorder %s13, 1
    %p30 = por %p28, %p29
    %p31 = scmp.ne.s32.totalorder %s23, %s26
    %p32 = scmp.eq.s32.totalorder %s13, 0
    %p33 = por %p31, %p32
    %p34 = scmp.ne.s32.totalorder %s23, %s26
    %p35 = scmp.eq.s32.totalorder %s18, 1
    %p36 = por %p34, %p35
    %p37 = scmp.ne.s32.totalorder %s26, %s27
    %p38 = scmp.eq.s32.totalorder %s18, 0
    %p39 = por %p37, %p38
    %p40 = scmp.ne.s32.totalorder %s26, %s27
    %p41 = scmp.eq.s32.totalorder %s19, 1
    %p42 = por %p40, %p41
    %p44 = scmp.ne.s32.totalorder %s27, %s43
    %p45 = scmp.eq.s32.totalorder %s19, 0
    %p46 = por %p44, %p45
    %s47 = ssub.s32 %s13, %s20
    %p48 = scmp.eq.s32.totalorder %s47, 0
    %s50 = sadd.s32 %s49, 1
    %s51 = scalar_select %p48, %s49, %s50
    %p54 = pneg %p48
    %p55 = scmp.eq.s32.totalorder %s13, 1
    %p56 = por %p54, %p55
    %p57 = scmp.ne.s32.totalorder %s49, %s52
    %p58 = scmp.eq.s32.totalorder %s13, 0
    %p59 = por %p57, %p58
    %p60 = scmp.ne.s32.totalorder %s49, %s52
    %p61 = scmp.eq.s32.totalorder %s18, 1
    %p62 = por %p60, %p61
    %p63 = scmp.ne.s32.totalorder %s52, %s53
    %p64 = scmp.eq.s32.totalorder %s18, 0
    %p65 = por %p63, %p64
    %p66 = scmp.ne.s32.totalorder %s52, %s53
    %p67 = scmp.eq.s32.totalorder %s19, 1
    %p68 = por %p66, %p67
    %p70 = scmp.ne.s32.totalorder %s53, %s69
    %p71 = scmp.eq.s32.totalorder %s19, 0
    %p72 = por %p70, %p71
    %s74 = sadd.s32 %s73, 1
    %p77 = scmp.eq.s32.totalorder %s13, 1
    %p78 = scmp.ne.s32.totalorder %s73, %s75
    %p79 = scmp.eq.s32.totalorder %s13, 0
    %p80 = por %p78, %p79
    %p81 = scmp.ne.s32.totalorder %s73, %s75
    %p82 = scmp.eq.s32.totalorder %s18, 1
    %p83 = por %p81, %p82
    %p84 = scmp.ne.s32.totalorder %s75, %s76
    %p85 = scmp.eq.s32.totalorder %s18, 0
    %p86 = por %p84, %p85
    %p87 = scmp.ne.s32.totalorder %s75, %s76
    %p88 = scmp.eq.s32.totalorder %s19, 1
    %p89 = por %p87, %p88
    %p91 = scmp.ne.s32.totalorder %s76, %s90
    %p92 = scmp.eq.s32.totalorder %s19, 0
    %p93 = por %p91, %p92
    %s95 = sadd.s32 %s94, 1
    %p98 = scmp.eq.s32.totalorder %s13, 1
    %p99 = scmp.ne.s32.totalorder %s94, %s96
    %p100 = scmp.eq.s32.totalorder %s13, 0
    %p101 = por %p99, %p100
    %p102 = scmp.ne.s32.totalorder %s94, %s96
    %p103 = scmp.eq.s32.totalorder %s18, 1
    %p104 = por %p102, %p103
    %p105 = scmp.ne.s32.totalorder %s96, %s97
    %p106 = scmp.eq.s32.totalorder %s18, 0
    %p107 = por %p105, %p106
    %p108 = scmp.ne.s32.totalorder %s96, %s97
    %p109 = scmp.eq.s32.totalorder %s19, 1
    %p110 = por %p108, %p109
    %p112 = scmp.ne.s32.totalorder %s97, %s111
    %p113 = scmp.eq.s32.totalorder %s19, 0
    %p114 = por %p112, %p113
    %s116 = sadd.s32 %s115, 1
    %p119 = scmp.eq.s32.totalorder %s13, 1
    %p120 = scmp.ne.s32.totalorder %s115, %s117
    %p121 = scmp.eq.s32.totalorder %s13, 0
    %p122 = por %p120, %p121
    %p123 = scmp.ne.s32.totalorder %s115, %s117
    %p124 = scmp.eq.s32.totalorder %s18, 1
    %p125 = por %p123, %p124
    %p126 = scmp.ne.s32.totalorder %s117, %s118
    %p127 = scmp.eq.s32.totalorder %s18, 0
    %p128 = por %p126, %p127
    %p129 = scmp.ne.s32.totalorder %s117, %s118
    %p130 = scmp.eq.s32.totalorder %s19, 1
    %p131 = por %p129, %p130
    %p133 = scmp.ne.s32.totalorder %s118, %s132
    %p134 = scmp.eq.s32.totalorder %s19, 0
    %p135 = por %p133, %p134
    %s137 = sadd.s32 %s136, 1
    %p140 = scmp.eq.s32.totalorder %s13, 1
    %p141 = scmp.ne.s32.totalorder %s136, %s138
    %p142 = scmp.eq.s32.totalorder %s13, 0
    %p143 = por %p141, %p142
    %p144 = scmp.ne.s32.totalorder %s136, %s138
    %p145 = scmp.eq.s32.totalorder %s18, 1
    %p146 = por %p144, %p145
    %p147 = scmp.ne.s32.totalorder %s138, %s139
    %p148 = scmp.eq.s32.totalorder %s18, 0
    %p149 = por %p147, %p148
    %p150 = scmp.ne.s32.totalorder %s138, %s139
    %p151 = scmp.eq.s32.totalorder %s19, 1
    %p152 = por %p150, %p151
    %p154 = scmp.ne.s32.totalorder %s139, %s153
    %p155 = scmp.eq.s32.totalorder %s19, 0
    %p156 = por %p154, %p155
    %s158 = sadd.s32 %s157, 1
    %p161 = scmp.eq.s32.totalorder %s13, 1
    %p162 = scmp.ne.s32.totalorder %s157, %s159
    %p163 = scmp.eq.s32.totalorder %s13, 0
    %p164 = por %p162, %p163
    %p165 = scmp.ne.s32.totalorder %s157, %s159
    %p166 = scmp.eq.s32.totalorder %s18, 1
    %p167 = por %p165, %p166
    %p168 = scmp.ne.s32.totalorder %s159, %s160
    %p169 = scmp.eq.s32.totalorder %s18, 0
    %p170 = por %p168, %p169
    %p171 = scmp.ne.s32.totalorder %s159, %s160
    %p172 = scmp.eq.s32.totalorder %s19, 1
    %p173 = por %p171, %p172
    %p175 = scmp.ne.s32.totalorder %s160, %s174
    %p176 = scmp.eq.s32.totalorder %s19, 0
    %p177 = por %p175, %p176
    %s178 = ssub.s32 %s13, %s20
    %p179 = scmp.eq.s32.totalorder %s178, 0
    %s181 = sadd.s32 %s180, 1
    %s182 = scalar_select %p179, %s180, %s181
    %p185 = pneg %p179
    %p186 = scmp.eq.s32.totalorder %s13, 1
    %p187 = por %p185, %p186
    %p188 = scmp.ne.s32.totalorder %s180, %s183
    %p189 = scmp.eq.s32.totalorder %s13, 0
    %p190 = por %p188, %p189
    %p191 = scmp.ne.s32.totalorder %s180, %s183
    %p192 = scmp.eq.s32.totalorder %s18, 1
    %p193 = por %p191, %p192
    %p194 = scmp.ne.s32.totalorder %s183, %s184
    %p195 = scmp.eq.s32.totalorder %s18, 0
    %p196 = por %p194, %p195
    %p197 = scmp.ne.s32.totalorder %s183, %s184
    %p198 = scmp.eq.s32.totalorder %s19, 1
    %p199 = por %p197, %p198
    %p201 = scmp.ne.s32.totalorder %s184, %s200
    %p202 = scmp.eq.s32.totalorder %s19, 0
    %p203 = por %p201, %p202
    %p204 = scmp.le.s32.totalorder 1, %s13
    %p205 = scmp.lt.s32.totalorder %s13, 3
    %p206 = pnand %p204, %p205
    %p207 = pneg %p206
    // Predicated region
    $region9: #{neural_dyn_forward.1} parent=5 // pred_check
      _
    $region10: #{neural_dyn_forward.1} parent=5 // pred_check_branch
      %209 = sbr.rel (%p206) target = $region12
    $region11: #{neural_dyn_forward.1} parent=5 // pred_region
      %s210 = ssub.s32 %s13, 1
      // Predicated region
      $region13: #{neural_dyn_forward.1} parent=11 // pred_check
        %p211 = pneg %p86
      $region14: #{neural_dyn_forward.1} parent=11 // pred_check_branch
        %213 = sbr.rel (%p211) target = $region16
      $region15: #{neural_dyn_forward.1} parent=11 // pred_region
        _
      $region16: #{neural_dyn_forward.1} parent=11 // pred_fallthru
        _
      // Predicated region
      $region17: #{neural_dyn_forward.1} parent=11 // pred_check
        %p214 = pneg %p107
      $region18: #{neural_dyn_forward.1} parent=11 // pred_check_branch
        %216 = sbr.rel (%p214) target = $region20
      $region19: #{neural_dyn_forward.1} parent=11 // pred_region
        _
      $region20: #{neural_dyn_forward.1} parent=11 // pred_fallthru
        _
      // Predicated region
      $region21: #{neural_dyn_forward.1} parent=11 // pred_check
        %p217 = pneg %p128
      $region22: #{neural_dyn_forward.1} parent=11 // pred_check_branch
        %219 = sbr.rel (%p217) target = $region24
      $region23: #{neural_dyn_forward.1} parent=11 // pred_region
        _
      $region24: #{neural_dyn_forward.1} parent=11 // pred_fallthru
        _
      // Predicated region
      $region25: #{neural_dyn_forward.1} parent=11 // pred_check
        %p220 = pneg %p149
      $region26: #{neural_dyn_forward.1} parent=11 // pred_check_branch
        %222 = sbr.rel (%p220) target = $region28
      $region27: #{neural_dyn_forward.1} parent=11 // pred_region
        _
      $region28: #{neural_dyn_forward.1} parent=11 // pred_fallthru
        _
      // Predicated region
      $region29: #{neural_dyn_forward.1} parent=11 // pred_check
        %p223 = pneg %p170
      $region30: #{neural_dyn_forward.1} parent=11 // pred_check_branch
        %225 = sbr.rel (%p223) target = $region32
      $region31: #{neural_dyn_forward.1} parent=11 // pred_region
        _
      $region32: #{neural_dyn_forward.1} parent=11 // pred_fallthru
        _
    $region12: #{neural_dyn_forward.1} parent=5 // pred_fallthru
      _
    %p226 = scmp.lt.s32.totalorder %s13, 2
    // Predicated region
    $region33: #{neural_dyn_forward.1} parent=5 // pred_check
      %p227 = pneg %p226
    $region34: #{neural_dyn_forward.1} parent=5 // pred_check_branch
      %229 = sbr.rel (%p227) target = $region36
    $region35: #{neural_dyn_forward.1} parent=5 // pred_region
      // Predicated region
      $region37: #{neural_dyn_forward.1} parent=35 // pred_check
        %p230 = pneg %p33
      $region38: #{neural_dyn_forward.1} parent=35 // pred_check_branch
        %232 = sbr.rel (%p230) target = $region40
      $region39: #{neural_dyn_forward.1} parent=35 // pred_region
        %s233 = smul.u32 16, %s13
        %p234 = scmp.lt.s32.totalorder %s233, 31
        %s235 = scalar_select %p234, %s233, 31
        %s236 = smul.addr %s235, 8
        %s237 = scalar_lea.vmem %s0, %s236
        %s238 = smul.u32 16, %s13
      $region40: #{neural_dyn_forward.1} parent=35 // pred_fallthru
        _
      // Predicated region
      $region41: #{neural_dyn_forward.1} parent=35 // pred_check
        %p239 = pneg %p59
      $region42: #{neural_dyn_forward.1} parent=35 // pred_check_branch
        %241 = sbr.rel (%p239) target = $region44
      $region43: #{neural_dyn_forward.1} parent=35 // pred_region
        %s242 = smul.u32 16, %s13
        %p243 = scmp.lt.s32.totalorder %s242, 31
        %s244 = scalar_select %p243, %s242, 31
        %s245 = smul.addr %s244, 8
        %s246 = scalar_lea.vmem %s1, %s245
        %s247 = smul.u32 16, %s13
      $region44: #{neural_dyn_forward.1} parent=35 // pred_fallthru
        _
    $region36: #{neural_dyn_forward.1} parent=5 // pred_fallthru
      _
    %p248 = scmp.le.s32.totalorder 1, %s13
    %p249 = scmp.lt.s32.totalorder %s13, 3
    %p250 = pnand %p248, %p249
    %p251 = pneg %p250
    // Predicated region
    $region45: #{neural_dyn_forward.1} parent=5 // pred_check
      _
    $region46: #{neural_dyn_forward.1} parent=5 // pred_check_branch
      %253 = sbr.rel (%p250) target = $region48
    $region47: #{neural_dyn_forward.1} parent=5 // pred_region
      %s254 = ssub.s32 %s13, 1
      %s255 = smul.u32 16, %s18
      %p256 = scmp.lt.s32.totalorder %s255, 31
      %s257 = scalar_select %p256, %s255, 31
      %s258 = smul.addr %s257, 8
      %s259 = scalar_lea.vmem %s0, %s258
      %p260 = pneg %p39
      %p261 = pneg %p36
      %s262 = smul.u32 16, %s18
      %p263 = scmp.lt.s32.totalorder %s262, 31
      %s264 = scalar_select %p263, %s262, 31
      %s265 = smul.addr %s264, 8
      %s266 = scalar_lea.vmem %s1, %s265
      %p267 = pneg %p65
      %p268 = pneg %p62
      %p269 = pneg %p86
      %p270 = pneg %p83
      %p271 = pneg %p107
      %p272 = pneg %p104
      %p273 = pneg %p128
      %p274 = pneg %p125
      %p275 = pneg %p149
      %p276 = pneg %p146
      %p277 = pneg %p170
      %p278 = pneg %p167
      %p279 = pneg %p196
      %p280 = pneg %p193
      %s281 = smul.u32 16, %s18
      %p282 = scmp.lt.s32.totalorder %s281, 31
      %s283 = scalar_select %p282, %s281, 31
      %s284 = smul.addr %s283, 8
      %s285 = scalar_lea.vmem %s7, %s284
      %s286 = smul.u32 16, %s18
      %p287 = scmp.lt.s32.totalorder %s286, 31
      %s288 = scalar_select %p287, %s286, 31
      %s289 = smul.addr %s288, 8
      %s290 = scalar_lea.vmem %s0, %s289
      %s291 = smul.u32 16, %s18
      %s292 = smul.u32 16, %s18
      %p293 = scmp.lt.s32.totalorder %s292, 31
      %s294 = scalar_select %p293, %s292, 31
      %s295 = smul.addr %s294, 8
      %s296 = scalar_lea.vmem %s1, %s295
      %s297 = smul.u32 16, %s18
      %s298 = smul.u32 16, %s18
      %p299 = scmp.lt.s32.totalorder %s298, 31
      %s300 = scalar_select %p299, %s298, 31
      %s301 = smul.addr %s300, 8
      %s302 = scalar_lea.vmem %s7, %s301
      %s303 = smul.u32 16, %s18
      %v305 = vld [vmem:[%s290] sm:$0xff]
      %v306 = vld [vmem:[%s290 + $0x8] sm:$0xff]
      %v307 = vld [vmem:[%s290 + $0x10] sm:$0xff]
      %v308 = vld [vmem:[%s290 + $0x18] sm:$0xff]
      %v309 = vld [vmem:[%s290 + $0x20] sm:$0xff]
      %v310 = vld [vmem:[%s290 + $0x28] sm:$0xff]
      %v311 = vld [vmem:[%s290 + $0x30] sm:$0xff]
      %v312 = vld [vmem:[%s290 + $0x38] sm:$0xff]
      %v313 = vld [vmem:[%s290 + $0x40] sm:$0xff]
      %v314 = vld [vmem:[%s290 + $0x48] sm:$0xff]
      %v315 = vld [vmem:[%s290 + $0x50] sm:$0xff]
      %v316 = vld [vmem:[%s290 + $0x58] sm:$0xff]
      %v317 = vld [vmem:[%s290 + $0x60] sm:$0xff]
      %v318 = vld [vmem:[%s290 + $0x68] sm:$0xff]
      %v319 = vld [vmem:[%s290 + $0x70] sm:$0xff]
      %v320 = vld [vmem:[%s290 + $0x78] sm:$0xff]
      %v321 = vmax.f32 %v305, 0.0
      %v322 = vmax.f32 %v306, 0.0
      %v323 = vmax.f32 %v307, 0.0
      %v324 = vmax.f32 %v308, 0.0
      %v325 = vmax.f32 %v309, 0.0
      %v326 = vmax.f32 %v310, 0.0
      %v327 = vmax.f32 %v311, 0.0
      %v328 = vmax.f32 %v312, 0.0
      %v329 = vmax.f32 %v313, 0.0
      %v330 = vmax.f32 %v314, 0.0
      %v331 = vmax.f32 %v315, 0.0
      %v332 = vmax.f32 %v316, 0.0
      %v333 = vmax.f32 %v317, 0.0
      %v334 = vmax.f32 %v318, 0.0
      %v335 = vmax.f32 %v319, 0.0
      %v336 = vmax.f32 %v320, 0.0
      %v337 = vpack.c.bf16 %v322, %v321
      %v338 = vpack.c.bf16 %v324, %v323
      %v339 = vpack.c.bf16 %v326, %v325
      %v340 = vpack.c.bf16 %v328, %v327
      %v341 = vpack.c.bf16 %v330, %v329
      %v342 = vpack.c.bf16 %v332, %v331
      %v343 = vpack.c.bf16 %v334, %v333
      %v344 = vpack.c.bf16 %v336, %v335
      %v345 = vld [vmem:[%s2] sm:$0xf]
      %v346 = vld [vmem:[%s2 + $0x4] sm:$0xf]
      %v347 = vld [vmem:[%s2 + $0x8] sm:$0xf]
      %v348 = vld [vmem:[%s2 + $0xc] sm:$0xf]
      %v349 = vld [vmem:[%s3] sm:$0x1]
      %v351 = vperm.slane %v349, 0
      %v357 = vunpack.c.l.b16 %v345
      %v358 = vunpack.c.l.b16 %v346
      %v359 = vunpack.c.l.b16 %v347
      %v360 = vunpack.c.l.b16 %v348
      %v361 = vpack.c.b16 %v358, %v357
      %v362 = vpack.c.b16 %v360, %v359
      %vm365 = vcmask 261120
      %v367 = vsel %vm365, %v337, 0
      %v370 = vsel %vm365, %v338, 0
      %v373 = vsel %vm365, %v339, 0
      %v376 = vsel %vm365, %v340, 0
      %v379 = vsel %vm365, %v341, 0
      %v382 = vsel %vm365, %v342, 0
      %v385 = vsel %vm365, %v343, 0
      %v388 = vsel %vm365, %v344, 0
      %390 = vmatpush.bf16.msra.mxu0 0
      %391 = vmatpush.bf16.msra.mxu0 0
      %392 = vmatpush.bf16.msra.mxu0 0
      %393 = vmatpush.bf16.msra.mxu0 0
      %394 = vmatpush.bf16.msra.mxu0 0
      %395 = vmatpush.bf16.msra.mxu0 0
      %396 = vmatpush.bf16.msra.mxu0 %v362
      %397 = vmatpush.bf16.msra.mxu0 %v361
      %398 = vmatmul.bf16.gmra.mxu0 %v367
      %v399 = vpop.f32.mrf.mxu0
      %v400 = vadd.f32 %v351, %v399
      %v401 = vpop.f32.mrf.mxu0
      %v402 = vadd.f32 %v351, %v401
      %403 = vmatmul.bf16.gmra.mxu0 %v370
      %v404 = vpop.f32.mrf.mxu0
      %v405 = vadd.f32 %v351, %v404
      %v406 = vpop.f32.mrf.mxu0
      %v407 = vadd.f32 %v351, %v406
      %408 = vmatmul.bf16.gmra.mxu0 %v373
      %v409 = vpop.f32.mrf.mxu0
      %v410 = vadd.f32 %v351, %v409
      %v411 = vpop.f32.mrf.mxu0
      %v412 = vadd.f32 %v351, %v411
      %413 = vmatmul.bf16.gmra.mxu0 %v376
      %v414 = vpop.f32.mrf.mxu0
      %v415 = vadd.f32 %v351, %v414
      %v416 = vpop.f32.mrf.mxu0
      %v417 = vadd.f32 %v351, %v416
      %418 = vmatmul.bf16.gmra.mxu0 %v379
      %v419 = vpop.f32.mrf.mxu0
      %v420 = vadd.f32 %v351, %v419
      %v421 = vpop.f32.mrf.mxu0
      %v422 = vadd.f32 %v351, %v421
      %423 = vmatmul.bf16.gmra.mxu0 %v382
      %v424 = vpop.f32.mrf.mxu0
      %v425 = vadd.f32 %v351, %v424
      %v426 = vpop.f32.mrf.mxu0
      %v427 = vadd.f32 %v351, %v426
      %428 = vmatmul.bf16.gmra.mxu0 %v385
      %v429 = vpop.f32.mrf.mxu0
      %v430 = vadd.f32 %v351, %v429
      %v431 = vpop.f32.mrf.mxu0
      %v432 = vadd.f32 %v351, %v431
      %433 = vmatmul.bf16.gmra.mxu0 %v388
      %v434 = vpop.f32.mrf.mxu0
      %v435 = vadd.f32 %v351, %v434
      %v436 = vpop.f32.mrf.mxu0
      %v437 = vadd.f32 %v351, %v436
      %438 = vdwg.mxu0
      %v439 = vsub.f32 %v400, %v305
      %v440 = vsub.f32 %v402, %v306
      %v441 = vsub.f32 %v405, %v307
      %v442 = vsub.f32 %v407, %v308
      %v443 = vsub.f32 %v410, %v309
      %v444 = vsub.f32 %v412, %v310
      %v445 = vsub.f32 %v415, %v311
      %v446 = vsub.f32 %v417, %v312
      %v447 = vsub.f32 %v420, %v313
      %v448 = vsub.f32 %v422, %v314
      %v449 = vsub.f32 %v425, %v315
      %v450 = vsub.f32 %v427, %v316
      %v451 = vsub.f32 %v430, %v317
      %v452 = vsub.f32 %v432, %v318
      %v453 = vsub.f32 %v435, %v319
      %v454 = vsub.f32 %v437, %v320
      %v455 = vld [vmem:[%s4] sm:$0x1]
      %v457 = vperm.slane %v455, 0
      %v459 = vmul.f32 %v457, %v439
      %v460 = vmul.f32 %v457, %v440
      %v461 = vmul.f32 %v457, %v441
      %v462 = vmul.f32 %v457, %v442
      %v463 = vmul.f32 %v457, %v443
      %v464 = vmul.f32 %v457, %v444
      %v465 = vmul.f32 %v457, %v445
      %v466 = vmul.f32 %v457, %v446
      %v467 = vmul.f32 %v457, %v447
      %v468 = vmul.f32 %v457, %v448
      %v469 = vmul.f32 %v457, %v449
      %v470 = vmul.f32 %v457, %v450
      %v471 = vmul.f32 %v457, %v451
      %v472 = vmul.f32 %v457, %v452
      %v473 = vmul.f32 %v457, %v453
      %v474 = vmul.f32 %v457, %v454
      %v475 = vpack.c.bf16 %v460, %v459
      %v476 = vpack.c.bf16 %v462, %v461
      %v477 = vpack.c.bf16 %v464, %v463
      %v478 = vpack.c.bf16 %v466, %v465
      %v479 = vpack.c.bf16 %v468, %v467
      %v480 = vpack.c.bf16 %v470, %v469
      %v481 = vpack.c.bf16 %v472, %v471
      %v482 = vpack.c.bf16 %v474, %v473
      %v483 = vld [vmem:[%s5] sm:$0xf]
      %v484 = vld [vmem:[%s5 + $0x4] sm:$0xf]
      %v485 = vld [vmem:[%s5 + $0x8] sm:$0xf]
      %v486 = vld [vmem:[%s5 + $0xc] sm:$0xf]
      %v491 = vunpack.c.l.b16 %v483
      %v492 = vunpack.c.l.b16 %v484
      %v493 = vunpack.c.l.b16 %v485
      %v494 = vunpack.c.l.b16 %v486
      %v495 = vpack.c.b16 %v492, %v491
      %v496 = vpack.c.b16 %v494, %v493
      %v500 = vsel %vm365, %v475, 0
      %v503 = vsel %vm365, %v476, 0
      %v506 = vsel %vm365, %v477, 0
      %v509 = vsel %vm365, %v478, 0
      %v512 = vsel %vm365, %v479, 0
      %v515 = vsel %vm365, %v480, 0
      %v518 = vsel %vm365, %v481, 0
      %v521 = vsel %vm365, %v482, 0
      %523 = vmatpush.bf16.msra.mxu0 0
      %524 = vmatpush.bf16.msra.mxu0 0
      %525 = vmatpush.bf16.msra.mxu0 0
      %526 = vmatpush.bf16.msra.mxu0 0
      %527 = vmatpush.bf16.msra.mxu0 0
      %528 = vmatpush.bf16.msra.mxu0 0
      %529 = vmatpush.bf16.msra.mxu0 %v496
      %530 = vmatpush.bf16.msra.mxu0 %v495
      %531 = vmatmul.bf16.gmra.mxu0 %v500
      %v532 = vpop.f32.mrf.mxu0
      %v533 = vadd.f32 0.0, %v532
      %v534 = vpop.f32.mrf.mxu0
      %v535 = vadd.f32 0.0, %v534
      %536 = vmatmul.bf16.gmra.mxu0 %v503
      %v537 = vpop.f32.mrf.mxu0
      %v538 = vadd.f32 0.0, %v537
      %v539 = vpop.f32.mrf.mxu0
      %v540 = vadd.f32 0.0, %v539
      %541 = vmatmul.bf16.gmra.mxu0 %v506
      %v542 = vpop.f32.mrf.mxu0
      %v543 = vadd.f32 0.0, %v542
      %v544 = vpop.f32.mrf.mxu0
      %v545 = vadd.f32 0.0, %v544
      %546 = vmatmul.bf16.gmra.mxu0 %v509
      %v547 = vpop.f32.mrf.mxu0
      %v548 = vadd.f32 0.0, %v547
      %v549 = vpop.f32.mrf.mxu0
      %v550 = vadd.f32 0.0, %v549
      %551 = vmatmul.bf16.gmra.mxu0 %v512
      %v552 = vpop.f32.mrf.mxu0
      %v553 = vadd.f32 0.0, %v552
      %v554 = vpop.f32.mrf.mxu0
      %v555 = vadd.f32 0.0, %v554
      %556 = vmatmul.bf16.gmra.mxu0 %v515
      %v557 = vpop.f32.mrf.mxu0
      %v558 = vadd.f32 0.0, %v557
      %v559 = vpop.f32.mrf.mxu0
      %v560 = vadd.f32 0.0, %v559
      %561 = vmatmul.bf16.gmra.mxu0 %v518
      %v562 = vpop.f32.mrf.mxu0
      %v563 = vadd.f32 0.0, %v562
      %v564 = vpop.f32.mrf.mxu0
      %v565 = vadd.f32 0.0, %v564
      %566 = vmatmul.bf16.gmra.mxu0 %v521
      %v567 = vpop.f32.mrf.mxu0
      %v568 = vadd.f32 0.0, %v567
      %v569 = vpop.f32.mrf.mxu0
      %v570 = vadd.f32 0.0, %v569
      %571 = vdwg.mxu0
      %v572 = vpack.c.bf16 %v535, %v533
      %v573 = vpack.c.bf16 %v540, %v538
      %v574 = vpack.c.bf16 %v545, %v543
      %v575 = vpack.c.bf16 %v550, %v548
      %v576 = vpack.c.bf16 %v555, %v553
      %v577 = vpack.c.bf16 %v560, %v558
      %v578 = vpack.c.bf16 %v565, %v563
      %v579 = vpack.c.bf16 %v570, %v568
      %v580 = vld [vmem:[%s6] sm:$0xf]
      %v581 = vld [vmem:[%s6 + $0x4] sm:$0xf]
      %v582 = vld [vmem:[%s6 + $0x8] sm:$0xf]
      %v583 = vld [vmem:[%s6 + $0xc] sm:$0xf]
      %v588 = vunpack.c.l.b16 %v580
      %v589 = vunpack.c.l.b16 %v581
      %v590 = vunpack.c.l.b16 %v582
      %v591 = vunpack.c.l.b16 %v583
      %v592 = vpack.c.b16 %v589, %v588
      %v593 = vpack.c.b16 %v591, %v590
      %v597 = vsel %vm365, %v572, 0
      %v600 = vsel %vm365, %v573, 0
      %v603 = vsel %vm365, %v574, 0
      %v606 = vsel %vm365, %v575, 0
      %v609 = vsel %vm365, %v576, 0
      %v612 = vsel %vm365, %v577, 0
      %v615 = vsel %vm365, %v578, 0
      %v618 = vsel %vm365, %v579, 0
      %620 = vmatpush.bf16.msra.mxu0 0
      %621 = vmatpush.bf16.msra.mxu0 0
      %622 = vmatpush.bf16.msra.mxu0 0
      %623 = vmatpush.bf16.msra.mxu0 0
      %624 = vmatpush.bf16.msra.mxu0 0
      %625 = vmatpush.bf16.msra.mxu0 0
      %626 = vmatpush.bf16.msra.mxu0 %v593
      %627 = vmatpush.bf16.msra.mxu0 %v592
      %628 = vmatmul.bf16.gmra.mxu0 %v597
      %v629 = vpop.f32.mrf.mxu0
      %v630 = vadd.f32 0.0, %v629
      %v631 = vpop.f32.mrf.mxu0
      %v632 = vadd.f32 0.0, %v631
      %633 = vmatmul.bf16.gmra.mxu0 %v600
      %v634 = vpop.f32.mrf.mxu0
      %v635 = vadd.f32 0.0, %v634
      %v636 = vpop.f32.mrf.mxu0
      %v637 = vadd.f32 0.0, %v636
      %638 = vmatmul.bf16.gmra.mxu0 %v603
      %v639 = vpop.f32.mrf.mxu0
      %v640 = vadd.f32 0.0, %v639
      %v641 = vpop.f32.mrf.mxu0
      %v642 = vadd.f32 0.0, %v641
      %643 = vmatmul.bf16.gmra.mxu0 %v606
      %v644 = vpop.f32.mrf.mxu0
      %v645 = vadd.f32 0.0, %v644
      %v646 = vpop.f32.mrf.mxu0
      %v647 = vadd.f32 0.0, %v646
      %648 = vmatmul.bf16.gmra.mxu0 %v609
      %v649 = vpop.f32.mrf.mxu0
      %v650 = vadd.f32 0.0, %v649
      %v651 = vpop.f32.mrf.mxu0
      %v652 = vadd.f32 0.0, %v651
      %653 = vmatmul.bf16.gmra.mxu0 %v612
      %v654 = vpop.f32.mrf.mxu0
      %v655 = vadd.f32 0.0, %v654
      %v656 = vpop.f32.mrf.mxu0
      %v657 = vadd.f32 0.0, %v656
      %658 = vmatmul.bf16.gmra.mxu0 %v615
      %v659 = vpop.f32.mrf.mxu0
      %v660 = vadd.f32 0.0, %v659
      %v661 = vpop.f32.mrf.mxu0
      %v662 = vadd.f32 0.0, %v661
      %663 = vmatmul.bf16.gmra.mxu0 %v618
      %v664 = vpop.f32.mrf.mxu0
      %v665 = vadd.f32 0.0, %v664
      %v666 = vpop.f32.mrf.mxu0
      %v667 = vadd.f32 0.0, %v666
      %668 = vdwg.mxu0
      %v669 = vmul.f32 %v630, 0.001
      %v670 = vmul.f32 %v632, 0.001
      %v671 = vmul.f32 %v635, 0.001
      %v672 = vmul.f32 %v637, 0.001
      %v673 = vmul.f32 %v640, 0.001
      %v674 = vmul.f32 %v642, 0.001
      %v675 = vmul.f32 %v645, 0.001
      %v676 = vmul.f32 %v647, 0.001
      %v677 = vmul.f32 %v650, 0.001
      %v678 = vmul.f32 %v652, 0.001
      %v679 = vmul.f32 %v655, 0.001
      %v680 = vmul.f32 %v657, 0.001
      %v681 = vmul.f32 %v660, 0.001
      %v682 = vmul.f32 %v662, 0.001
      %v683 = vmul.f32 %v665, 0.001
      %v684 = vmul.f32 %v667, 0.001
      %v685 = vadd.f32 %v305, %v669
      %v686 = vadd.f32 %v306, %v670
      %v687 = vadd.f32 %v307, %v671
      %v688 = vadd.f32 %v308, %v672
      %v689 = vadd.f32 %v309, %v673
      %v690 = vadd.f32 %v310, %v674
      %v691 = vadd.f32 %v311, %v675
      %v692 = vadd.f32 %v312, %v676
      %v693 = vadd.f32 %v313, %v677
      %v694 = vadd.f32 %v314, %v678
      %v695 = vadd.f32 %v315, %v679
      %v696 = vadd.f32 %v316, %v680
      %v697 = vadd.f32 %v317, %v681
      %v698 = vadd.f32 %v318, %v682
      %v699 = vadd.f32 %v319, %v683
      %v700 = vadd.f32 %v320, %v684
      %v701 = vld [vmem:[%s296] sm:$0xff]
      %v702 = vld [vmem:[%s296 + $0x8] sm:$0xff]
      %v703 = vld [vmem:[%s296 + $0x10] sm:$0xff]
      %v704 = vld [vmem:[%s296 + $0x18] sm:$0xff]
      %v705 = vld [vmem:[%s296 + $0x20] sm:$0xff]
      %v706 = vld [vmem:[%s296 + $0x28] sm:$0xff]
      %v707 = vld [vmem:[%s296 + $0x30] sm:$0xff]
      %v708 = vld [vmem:[%s296 + $0x38] sm:$0xff]
      %v709 = vld [vmem:[%s296 + $0x40] sm:$0xff]
      %v710 = vld [vmem:[%s296 + $0x48] sm:$0xff]
      %v711 = vld [vmem:[%s296 + $0x50] sm:$0xff]
      %v712 = vld [vmem:[%s296 + $0x58] sm:$0xff]
      %v713 = vld [vmem:[%s296 + $0x60] sm:$0xff]
      %v714 = vld [vmem:[%s296 + $0x68] sm:$0xff]
      %v715 = vld [vmem:[%s296 + $0x70] sm:$0xff]
      %v716 = vld [vmem:[%s296 + $0x78] sm:$0xff]
      %v717 = vmul.f32 %v701, 0.04472136
      %v718 = vmul.f32 %v702, 0.04472136
      %v719 = vmul.f32 %v703, 0.04472136
      %v720 = vmul.f32 %v704, 0.04472136
      %v721 = vmul.f32 %v705, 0.04472136
      %v722 = vmul.f32 %v706, 0.04472136
      %v723 = vmul.f32 %v707, 0.04472136
      %v724 = vmul.f32 %v708, 0.04472136
      %v725 = vmul.f32 %v709, 0.04472136
      %v726 = vmul.f32 %v710, 0.04472136
      %v727 = vmul.f32 %v711, 0.04472136
      %v728 = vmul.f32 %v712, 0.04472136
      %v729 = vmul.f32 %v713, 0.04472136
      %v730 = vmul.f32 %v714, 0.04472136
      %v731 = vmul.f32 %v715, 0.04472136
      %v732 = vmul.f32 %v716, 0.04472136
      %v733 = vadd.f32 %v685, %v717
      %v734 = vadd.f32 %v686, %v718
      %v735 = vadd.f32 %v687, %v719
      %v736 = vadd.f32 %v688, %v720
      %v737 = vadd.f32 %v689, %v721
      %v738 = vadd.f32 %v690, %v722
      %v739 = vadd.f32 %v691, %v723
      %v740 = vadd.f32 %v692, %v724
      %v741 = vadd.f32 %v693, %v725
      %v742 = vadd.f32 %v694, %v726
      %v743 = vadd.f32 %v695, %v727
      %v744 = vadd.f32 %v696, %v728
      %v745 = vadd.f32 %v697, %v729
      %v746 = vadd.f32 %v698, %v730
      %v747 = vadd.f32 %v699, %v731
      %v748 = vadd.f32 %v700, %v732
      %749 = vst.msk [vmem:[%s302] sm:$0xff] %vm365, %v733
      %750 = vst.msk [vmem:[%s302 + $0x8] sm:$0xff] %vm365, %v734
      %751 = vst.msk [vmem:[%s302 + $0x10] sm:$0xff] %vm365, %v735
      %752 = vst.msk [vmem:[%s302 + $0x18] sm:$0xff] %vm365, %v736
      %753 = vst.msk [vmem:[%s302 + $0x20] sm:$0xff] %vm365, %v737
      %754 = vst.msk [vmem:[%s302 + $0x28] sm:$0xff] %vm365, %v738
      %755 = vst.msk [vmem:[%s302 + $0x30] sm:$0xff] %vm365, %v739
      %756 = vst.msk [vmem:[%s302 + $0x38] sm:$0xff] %vm365, %v740
      %757 = vst.msk [vmem:[%s302 + $0x40] sm:$0xff] %vm365, %v741
      %758 = vst.msk [vmem:[%s302 + $0x48] sm:$0xff] %vm365, %v742
      %759 = vst.msk [vmem:[%s302 + $0x50] sm:$0xff] %vm365, %v743
      %760 = vst.msk [vmem:[%s302 + $0x58] sm:$0xff] %vm365, %v744
      %761 = vst.msk [vmem:[%s302 + $0x60] sm:$0xff] %vm365, %v745
      %762 = vst.msk [vmem:[%s302 + $0x68] sm:$0xff] %vm365, %v746
      %763 = vst.msk [vmem:[%s302 + $0x70] sm:$0xff] %vm365, %v747
      %764 = vst.msk [vmem:[%s302 + $0x78] sm:$0xff] %vm365, %v748
      %s765 = smul.u32 16, %s18
      %p766 = scmp.lt.s32.totalorder %s765, 31
      %s767 = scalar_select %p766, %s765, 31
      %s768 = smul.addr %s767, 8
      %s769 = scalar_lea.vmem %s7, %s768
      // Predicated region
      $region49: #{neural_dyn_forward.1} parent=47 // pred_check
        %p770 = pneg %p193
      $region50: #{neural_dyn_forward.1} parent=47 // pred_check_branch
        %772 = sbr.rel (%p770) target = $region52
      $region51: #{neural_dyn_forward.1} parent=47 // pred_region
        %s773 = smul.u32 16, %s18
      $region52: #{neural_dyn_forward.1} parent=47 // pred_fallthru
        _
    $region48: #{neural_dyn_forward.1} parent=5 // pred_fallthru
      _
    %p774 = scmp.le.s32.totalorder 2, %s13
    // Predicated region
    $region53: #{neural_dyn_forward.1} parent=5 // pred_check
      %p775 = pneg %p774
    $region54: #{neural_dyn_forward.1} parent=5 // pred_check_branch
      %777 = sbr.rel (%p775) target = $region56
    $region55: #{neural_dyn_forward.1} parent=5 // pred_region
      %s778 = ssub.s32 %s13, 2
      // Predicated region
      $region57: #{neural_dyn_forward.1} parent=55 // pred_check
        %p779 = pneg %p199
      $region58: #{neural_dyn_forward.1} parent=55 // pred_check_branch
        %781 = sbr.rel (%p779) target = $region60
      $region59: #{neural_dyn_forward.1} parent=55 // pred_region
        %s782 = smul.u32 16, %s19
        %p783 = scmp.lt.s32.totalorder %s782, 31
        %s784 = scalar_select %p783, %s782, 31
        %s785 = smul.addr %s784, 8
        %s786 = scalar_lea.vmem %s7, %s785
      $region60: #{neural_dyn_forward.1} parent=55 // pred_fallthru
        _
    $region56: #{neural_dyn_forward.1} parent=5 // pred_fallthru
      _
  $region6: #{neural_dyn_forward.1} parent=0 // loop_footer
    %s17 = sadd.s32 1, %s13
  $region7: #{neural_dyn_forward.1} parent=0 // loop_footer_branch
    %12 = sbr.rel target = $region3
  $region8: #{neural_dyn_forward.1} parent=0 // loop_exit
    _

</llo_original>
